<compile_context>
chip_gen: v7x
topology: tpu7x:2x2x1
jax: 0.10.0
libtpu: 0.0.40
codegen_flags: <defaults>
</compile_context>

<pallas_src>
import math
from functools import partial

import jax
import jax.numpy as jnp
from jax import lax
from jax.experimental import pallas as pl
from jax.experimental.pallas import tpu as pltpu

_VMEM_LIMIT = 32 * 1024 * 1024   # fits all of v5e/v6e/v7x (v7x has 64 MiB VMEM/TC)


# ------------------------------ tile pickers --------------------------------

def _pick_rows_tile(m, target=512):
    """Largest multiple-of-8 divisor of m that is <= target and gives >=2 blocks."""
    cands = [t for t in range(8, min(target, m) + 1, 8) if m % t == 0 and t < m]
    return max(cands) if cands else m


def _pick_k_tile(cin, target=512):
    """K tile: multiple of 128 dividing cin (or cin itself if small)."""
    if cin <= target:
        return cin
    for t in range(target, 0, -128):
        if cin % t == 0:
            return t
    return cin


# ----------------------------- Pallas kernels -------------------------------

def _matmul_bias_kernel(x_ref, w_ref, b_ref, o_ref, acc_ref):
    # x: (TM, TK), w: (TK, Cout), b: (1, Cout) -> o: (TM, Cout); K-reduction on grid axis 1
    k = pl.program_id(1)

    @pl.when(k == 0)
    def _init():
        acc_ref[...] = jnp.zeros_like(acc_ref)

    acc_ref[...] += jnp.dot(x_ref[...], w_ref[...],
                            preferred_element_type=jnp.float32)

    @pl.when(k == pl.num_programs(1) - 1)
    def _finalize():
        o_ref[...] = (acc_ref[...] + b_ref[...]).astype(o_ref.dtype)


def _lateral_kernel(x_ref, w_ref, b_ref, r_ref, o_ref, acc_ref, *, n_img, th, tw):
    # Fused: 1x1 conv (K-tiled) + bias + nearest-2x upsample of the coarse
    # residual r_ref ((n_img*th/2*tw/2, Cout)) added to the fine output
    # ((n_img*th*tw, Cout)). Upsample = 0/1 selection-matrix matmul (MXU).
    k = pl.program_id(1)

    @pl.when(k == 0)
    def _init():
        acc_ref[...] = jnp.zeros_like(acc_ref)

    acc_ref[...] += jnp.dot(x_ref[...], w_ref[...],
                            preferred_element_type=jnp.float32)

    @pl.when(k == pl.num_programs(1) - 1)
    def _finalize():
        th2, tw2 = th // 2, tw // 2
        rows = n_img * th * tw
        cols = n_img * th2 * tw2
        rid = lax.broadcasted_iota(jnp.int32, (rows, cols), 0)
        cid = lax.broadcasted_iota(jnp.int32, (rows, cols), 1)
        img = rid // (th * tw)
        rem = rid - img * (th * tw)
        hh = rem // tw
        ww = rem - hh * tw
        src = img * (th2 * tw2) + (hh // 2) * tw2 + (ww // 2)
        sel = (src == cid).astype(jnp.float32)
        up = jnp.dot(sel, r_ref[...], preferred_element_type=jnp.float32)
        o_ref[...] = (acc_ref[...] + b_ref[...] + up).astype(o_ref.dtype)


def _conv3x3_kernel(x_ref, w_ref, b_ref, o_ref, *, W):
    # x_ref: (1, (H+2)*(W+2), Cin)  -- SAME-padded image, spatial dims flattened.
    # o_ref: (1, L, Cout), L = (H-1)*(W+2)+W; row f = h*(W+2)+w is output pixel
    # (h, w) for w < W (the 2 trailing positions per image row are junk and are
    # sliced off in the wrapper). 9 whole-tile matmuls, one dense store.
    Wp = W + 2
    L = o_ref.shape[1]
    Cout = o_ref.shape[2]
    acc = jnp.zeros((L, Cout), jnp.float32)
    for kh in range(3):
        for kw in range(3):
            start = kh * Wp + kw
            acc = acc + jnp.dot(x_ref[0, start:start + L, :], w_ref[kh, kw],
                                preferred_element_type=jnp.float32)
    o_ref[0] = (acc + b_ref[...]).astype(o_ref.dtype)


# ------------------------------- wrappers ------------------------------------

def conv1x1(x, w, b):
    """1x1 conv + bias. x: NHWC, w: (Cin, Cout), b: (Cout,)."""
    N, H, W, Cin = x.shape
    Cout = w.shape[1]
    M = N * H * W
    tm = _pick_rows_tile(M)
    tk = _pick_k_tile(Cin)
    out = pl.pallas_call(
        _matmul_bias_kernel,
        grid=(M // tm, Cin // tk),
        out_shape=jax.ShapeDtypeStruct((M, Cout), jnp.float32),
        in_specs=[pl.BlockSpec((tm, tk), lambda i, k: (i, k)),
                  pl.BlockSpec((tk, Cout), lambda i, k: (k, 0)),
                  pl.BlockSpec((1, Cout), lambda i, k: (0, 0))],
        out_specs=pl.BlockSpec((tm, Cout), lambda i, k: (i, 0)),
        scratch_shapes=[pltpu.VMEM((tm, Cout), jnp.float32)],
        compiler_params=pltpu.CompilerParams(
            dimension_semantics=("parallel", "arbitrary"),
            vmem_limit_bytes=_VMEM_LIMIT),
    )(x.reshape(M, Cin), w, b.reshape(1, Cout))
    return out.reshape(N, H, W, Cout)


def lateral_conv_add(x, w, b, coarse):
    """Fused 1x1 conv + bias + F.interpolate(coarse, scale_factor=2) add.

    x: (N, H, W, Cin); coarse: (N, H//2, W//2, Cout) -> (N, H, W, Cout).
    """
    N, H, W, Cin = x.shape
    Cout = w.shape[1]
    H2, W2 = H // 2, W // 2
    M = N * H * W
    Mr = N * H2 * W2

    # H-strip height: even, divides H, strip rows (th*W) multiple of 32 so the
    # coarse block stays 8-sublane aligned, <= 512 rows. Else one full block.
    th = None
    for cand in range(H, 0, -1):
        if (H % cand == 0 and cand % 2 == 0 and (cand * W) % 32 == 0
                and cand * W <= 512):
            th = cand
            break
    if th is None:
        n_img, th, n_strips = N, H, 1
    else:
        n_img, n_strips = 1, N * (H // th)
    sr = n_img * th * W          # fine rows per strip
    rr = sr // 4                 # coarse rows per strip
    tk = _pick_k_tile(Cin)

    out = pl.pallas_call(
        partial(_lateral_kernel, n_img=n_img, th=th, tw=W),
        grid=(n_strips, Cin // tk),
        out_shape=jax.ShapeDtypeStruct((M, Cout), jnp.float32),
        in_specs=[pl.BlockSpec((sr, tk), lambda s, k: (s, k)),
                  pl.BlockSpec((tk, Cout), lambda s, k: (k, 0)),
                  pl.BlockSpec((1, Cout), lambda s, k: (0, 0)),
                  pl.BlockSpec((rr, Cout), lambda s, k: (s, 0))],
        out_specs=pl.BlockSpec((sr, Cout), lambda s, k: (s, 0)),
        scratch_shapes=[pltpu.VMEM((sr, Cout), jnp.float32)],
        compiler_params=pltpu.CompilerParams(
            dimension_semantics=("parallel", "arbitrary"),
            vmem_limit_bytes=_VMEM_LIMIT),
    )(x.reshape(M, Cin), w, b.reshape(1, Cout), coarse.reshape(Mr, Cout))
    return out.reshape(N, H, W, Cout)


def conv3x3_same(x, w, b):
    """SamePad2d(3,1) + Conv2d(k=3, s=1). x: NHWC, w: (3,3,Cin,Cout), b: (Cout,)."""
    N, H, W, Cin = x.shape
    Cout = w.shape[-1]
    Hp, Wp = H + 2, W + 2
    L = (H - 1) * Wp + W
    # TODO(synk): for large spatial sizes, replace the whole-image block with
    # row-strip tiling + 1-row halo to bound VMEM; whole image is fine at these sizes.
    xp = jnp.pad(x, ((0, 0), (1, 1), (1, 1), (0, 0)))
    xf = xp.reshape(N, Hp * Wp, Cin)
    out = pl.pallas_call(
        partial(_conv3x3_kernel, W=W),
        grid=(N,),
        out_shape=jax.ShapeDtypeStruct((N, L, Cout), jnp.float32),
        in_specs=[pl.BlockSpec((1, Hp * Wp, Cin), lambda n: (n, 0, 0)),
                  pl.BlockSpec((3, 3, Cin, Cout), lambda n: (0, 0, 0, 0)),
                  pl.BlockSpec((1, Cout), lambda n: (0, 0))],
        out_specs=pl.BlockSpec((1, L, Cout), lambda n: (n, 0, 0)),
        compiler_params=pltpu.CompilerParams(
            dimension_semantics=("parallel",),
            vmem_limit_bytes=_VMEM_LIMIT),
    )(xf, w, b.reshape(1, Cout))
    out = jnp.pad(out, ((0, 0), (0, H * Wp - L), (0, 0)))
    return out.reshape(N, H, Wp, Cout)[:, :, :W, :]


def upsample2_nearest(x):
    # matches F.interpolate(scale_factor=2) (mode='nearest'), NHWC — reference only
    return jnp.repeat(jnp.repeat(x, 2, axis=1), 2, axis=2)


# --------------------------- FPN forward pass --------------------------------

# TODO(synk): C1..C5 are external backbone nn.Modules passed to FPN.__init__;
# modeled as deterministic stand-in stages (stride-2 subsample + Pallas 1x1 conv)
# producing the channel/stride pyramid the FPN head expects.
def fpn_forward(x_nchw, params):
    x = jnp.transpose(x_nchw, (0, 2, 3, 1))              # NCHW -> NHWC

    c1 = conv1x1(x[:, ::2, ::2, :], *params['C1'])       # 16 -> 64
    c2 = conv1x1(c1, *params['C2'])                      # 64 -> 256
    c3 = conv1x1(c2[:, ::2, ::2, :], *params['C3'])      # 256 -> 512
    c4 = conv1x1(c3[:, ::2, ::2, :], *params['C4'])      # 512 -> 1024
    c5 = conv1x1(c4[:, ::2, ::2, :], *params['C5'])      # 1024 -> 2048

    p5 = conv1x1(c5, *params['P5_conv1'])
    p4 = lateral_conv_add(c4, *params['P4_conv1'], coarse=p5)
    p3 = lateral_conv_add(c3, *params['P3_conv1'], coarse=p4)
    p2 = lateral_conv_add(c2, *params['P2_conv1'], coarse=p3)

    # TODO(synk): per-level lateral(+add) + 3x3 could be fused into one call
    # (dual outputs + halo recompute); kept as separate calls here.
    p5 = conv3x3_same(p5, *params['P5_conv2'])
    p4 = conv3x3_same(p4, *params['P4_conv2'])
    p3 = conv3x3_same(p3, *params['P3_conv2'])
    p2 = conv3x3_same(p2, *params['P2_conv2'])

    p6 = p5[:, ::2, ::2, :]                              # nn.MaxPool2d(k=1, s=2)

    to_nchw = lambda t: jnp.transpose(t, (0, 3, 1, 2))   # NHWC -> NCHW
    return [to_nchw(p) for p in (p2, p3, p4, p5, p6)]


# --------------------------- plain-JAX reference -----------------------------

def ref_forward(x_nchw, params):
    x = jnp.transpose(x_nchw, (0, 2, 3, 1))
    hp = jax.lax.Precision.HIGHEST

    def c1x1(t, wb, res=None):
        w, b = wb
        o = jnp.einsum('nhwc,co->nhwo', t, w, precision=hp) + b
        return o if res is None else o + res

    def c3x3(t, wb):
        w, b = wb
        tp = jnp.pad(t, ((0, 0), (1, 1), (1, 1), (0, 0)))
        return jax.lax.conv_general_dilated(
            tp, w, (1, 1), 'VALID',
            dimension_numbers=('NHWC', 'HWIO', 'NHWC'), precision=hp) + b

    c1 = c1x1(x[:, ::2, ::2, :], params['C1'])
    c2 = c1x1(c1, params['C2'])
    c3 = c1x1(c2[:, ::2, ::2, :], params['C3'])
    c4 = c1x1(c3[:, ::2, ::2, :], params['C4'])
    c5 = c1x1(c4[:, ::2, ::2, :], params['C5'])
    p5 = c1x1(c5, params['P5_conv1'])
    p4 = c1x1(c4, params['P4_conv1'], upsample2_nearest(p5))
    p3 = c1x1(c3, params['P3_conv1'], upsample2_nearest(p4))
    p2 = c1x1(c2, params['P2_conv1'], upsample2_nearest(p3))
    p5 = c3x3(p5, params['P5_conv2'])
    p4 = c3x3(p4, params['P4_conv2'])
    p3 = c3x3(p3, params['P3_conv2'])
    p2 = c3x3(p2, params['P2_conv2'])
    p6 = p5[:, ::2, ::2, :]
    to_nchw = lambda t: jnp.transpose(t, (0, 3, 1, 2))
    return [to_nchw(p) for p in (p2, p3, p4, p5, p6)]


# ------------------------------- param init ----------------------------------

def init_conv_params(key, cin, cout, k=1):
    wkey, bkey = jax.random.split(key)
    scale = 1.0 / math.sqrt(cin * k * k)
    if k == 1:
        w = jax.random.normal(wkey, (cin, cout), jnp.float32) * scale
    else:
        w = jax.random.normal(wkey, (k, k, cin, cout), jnp.float32) * scale
    b = jax.random.normal(bkey, (cout,), jnp.float32) * 0.01
    return w, b


if __name__ == "__main__":
    key = jax.random.PRNGKey(0)
    keys = jax.random.split(key, 16)
    OUT = 128  # FPN out_channels

    params = {
        'C1': init_conv_params(keys[0], 16, 64),
        'C2': init_conv_params(keys[1], 64, 256),
        'C3': init_conv_params(keys[2], 256, 512),
        'C4': init_conv_params(keys[3], 512, 1024),
        'C5': init_conv_params(keys[4], 1024, 2048),
        'P5_conv1': init_conv_params(keys[5], 2048, OUT),
        'P4_conv1': init_conv_params(keys[6], 1024, OUT),
        'P3_conv1': init_conv_params(keys[7], 512, OUT),
        'P2_conv1': init_conv_params(keys[8], 256, OUT),
        'P5_conv2': init_conv_params(keys[9], OUT, OUT, k=3),
        'P4_conv2': init_conv_params(keys[10], OUT, OUT, k=3),
        'P3_conv2': init_conv_params(keys[11], OUT, OUT, k=3),
        'P2_conv2': init_conv_params(keys[12], OUT, OUT, k=3),
    }

    x = jax.random.normal(keys[13], (2, 16, 32, 32), jnp.float32)  # NCHW input

    outs = jax.block_until_ready(fpn_forward(x, params))

    expect = [(2, OUT, 16, 16), (2, OUT, 8, 8), (2, OUT, 4, 4),
              (2, OUT, 2, 2), (2, OUT, 1, 1)]
    got = [tuple(int(d) for d in o.shape) for o in outs]
    assert got == expect, (got, expect)

    refs = jax.block_until_ready(ref_forward(x, params))
    for o, r in zip(outs, refs):
        err = float(jnp.max(jnp.abs(o - r)))
        assert jnp.allclose(o, r, rtol=2e-2, atol=2e-2), f"max abs err {err}"

    print("KERNEL_OK")
</pallas_src>

<mosaic_0001>
module attributes {stable_mosaic.version = 11 : i64} {
  func.func @_matmul_bias_kernel(%arg0: i32, %arg1: i32, %arg2: memref<256x16xf32, #tpu.memory_space<vmem>>, %arg3: memref<16x64xf32, #tpu.memory_space<vmem>>, %arg4: memref<1x64xf32, #tpu.memory_space<vmem>>, %arg5: memref<256x64xf32, #tpu.memory_space<vmem>>, %arg6: memref<256x64xf32, #tpu.memory_space<vmem>>) attributes {dimension_semantics = [#tpu.dimension_semantics<parallel>, #tpu.dimension_semantics<arbitrary>], iteration_bounds = array<i64: 2, 1>, scalar_prefetch = 0 : i64, scratch_operands = 1 : i64, tpu.core_type = #tpu.core_type<tc>, window_params = [{transform_indices = @transform_0, window_bounds = array<i64: 256, 16>}, {transform_indices = @transform_1, window_bounds = array<i64: 16, 64>}, {pipeline_mode = #tpu.pipeline_mode<synchronous>, transform_indices = @transform_2, window_bounds = array<i64: 1, 64>}, {transform_indices = @transform_3, window_bounds = array<i64: 256, 64>}]} {
    %c0_i32 = arith.constant 0 : i32
    %0 = arith.cmpi eq, %arg1, %c0_i32 : i32
    %1 = arith.extui %0 : i1 to i32
    %c0_i32_0 = arith.constant 0 : i32
    %2 = arith.cmpi ne, %1, %c0_i32_0 : i32
    scf.if %2 {
      %cst_10 = arith.constant 0.000000e+00 : f32
      %12 = vector.broadcast %cst_10 : f32 to vector<256x64xf32>
      %c0_11 = arith.constant 0 : index
      %c0_12 = arith.constant 0 : index
      %13 = vector.load %arg6[%c0_11, %c0_12] : memref<256x64xf32, #tpu.memory_space<vmem>>, vector<256x64xf32>
      tpu.vector_store %arg6[%c0_11, %c0_12], %12 {strides = array<i32>} : memref<256x64xf32, #tpu.memory_space<vmem>>, vector<256x64xf32>,
    } else {
    }
    %c0 = arith.constant 0 : index
    %c0_1 = arith.constant 0 : index
    %3 = vector.load %arg6[%c0, %c0_1] : memref<256x64xf32, #tpu.memory_space<vmem>>, vector<256x64xf32>
    %c0_2 = arith.constant 0 : index
    %c0_3 = arith.constant 0 : index
    %4 = vector.load %arg2[%c0_2, %c0_3] : memref<256x16xf32, #tpu.memory_space<vmem>>, vector<256x16xf32>
    %c0_4 = arith.constant 0 : index
    %c0_5 = arith.constant 0 : index
    %5 = vector.load %arg3[%c0_4, %c0_5] : memref<16x64xf32, #tpu.memory_space<vmem>>, vector<16x64xf32>
    %cst = arith.constant dense<0.000000e+00> : vector<256x64xf32>
    %6 = tpu.matmul %4, %5, %cst {dimension_numbers = #tpu.dot_dimension_numbers<[1], [0], [0], [1], [0, 0, 1, 1], [], []>} : vector<256x16xf32>, vector<16x64xf32>, vector<256x64xf32> -> vector<256x64xf32>
    %7 = arith.addf %3, %6 : vector<256x64xf32>
    %c0_6 = arith.constant 0 : index
    %c0_7 = arith.constant 0 : index
    %8 = vector.load %arg6[%c0_6, %c0_7] : memref<256x64xf32, #tpu.memory_space<vmem>>, vector<256x64xf32>
    tpu.vector_store %arg6[%c0_6, %c0_7], %7 {strides = array<i32>} : memref<256x64xf32, #tpu.memory_space<vmem>>, vector<256x64xf32>,
    %c0_i32_8 = arith.constant 0 : i32
    %9 = arith.cmpi eq, %arg1, %c0_i32_8 : i32
    %10 = arith.extui %9 : i1 to i32
    %c0_i32_9 = arith.constant 0 : i32
    %11 = arith.cmpi ne, %10, %c0_i32_9 : i32
    scf.if %11 {
      %c0_10 = arith.constant 0 : index
      %c0_11 = arith.constant 0 : index
      %12 = vector.load %arg6[%c0_10, %c0_11] : memref<256x64xf32, #tpu.memory_space<vmem>>, vector<256x64xf32>
      %c0_12 = arith.constant 0 : index
      %c0_13 = arith.constant 0 : index
      %13 = vector.load %arg4[%c0_12, %c0_13] : memref<1x64xf32, #tpu.memory_space<vmem>>, vector<1x64xf32>
      %14 = vector.broadcast %13 : vector<1x64xf32> to vector<256x64xf32>
      %15 = arith.addf %12, %14 : vector<256x64xf32>
      %c0_14 = arith.constant 0 : index
      %c0_15 = arith.constant 0 : index
      %16 = vector.load %arg5[%c0_14, %c0_15] : memref<256x64xf32, #tpu.memory_space<vmem>>, vector<256x64xf32>
      tpu.vector_store %arg5[%c0_14, %c0_15], %15 {strides = array<i32>} : memref<256x64xf32, #tpu.memory_space<vmem>>, vector<256x64xf32>,
    } else {
    }
    return
  }
  func.func @transform_0(%arg0: i32, %arg1: i32) -> (i32, i32) {
    %c0_i32 = arith.constant 0 : i32
    return %arg0, %arg1 : i32, i32
  }
  func.func @transform_1(%arg0: i32, %arg1: i32) -> (i32, i32) {
    %c0_i32 = arith.constant 0 : i32
    %c0_i32_0 = arith.constant 0 : i32
    return %arg1, %c0_i32 : i32, i32
  }
  func.func @transform_2(%arg0: i32, %arg1: i32) -> (i32, i32) {
    %c0_i32 = arith.constant 0 : i32
    %c0_i32_0 = arith.constant 0 : i32
    %c0_i32_1 = arith.constant 0 : i32
    return %c0_i32, %c0_i32_0 : i32, i32
  }
  func.func @transform_3(%arg0: i32, %arg1: i32) -> (i32, i32) {
    %c0_i32 = arith.constant 0 : i32
    %c0_i32_0 = arith.constant 0 : i32
    return %arg0, %c0_i32 : i32, i32
  }
}

</mosaic_0001>

<llo_original>
// kernel: tpu_custom_call.1
$region0: #{tpu_custom_call.1}
  #allocation0 [shape = 'u32[]', space=smem, size = 0x4, offset = 0x4, fixed_abs, tag = 'smem constant byte address 0x4 - core index']
  #allocation1 [shape = 'u32[144,128]{1,0:T(1,128)}', space=vmem, size = 0x12000, scoped, tag = 'internal scratch']
  #allocation2 [shape = 'f32[256,64]{1,0:T(8,128)}', space=vmem, size = 0x20000, scoped, tag = 'scratch operand']
  %s0 = inlined_call_operand.vmem [shape: f32[512,16], index: 0, kind: input, shape index: {}]
  %s1 = inlined_call_operand.vmem [shape: f32[16,64], index: 1, kind: input, shape index: {}]
  %s2 = inlined_call_operand.vmem [shape: f32[1,64], index: 2, kind: input, shape index: {}]
  %s3 = inlined_call_operand.vmem [shape: f32[512,64], index: 3, kind: output, shape index: {}]
  %s4 = sld [smem:[#allocation0]]
  $region53: #{tpu_custom_call.1} parent=0
    _
  %s6 = ssub.s32 1, %s4
  %s7 = scalar_select 0, %s6, %s4
  loop: start=0, step=1, limit=4
  $region2: #{tpu_custom_call.1} parent=0 // loop_pre_header
    _
  $region3: #{tpu_custom_call.1} parent=0 // loop_header
    %s9 = sphi 0, %s13
    %p10 = scmp.ge.s32.totalorder %s9, 4
    %s16 = sphi 0, %s28
    %s17 = sphi 0, %s24
    %s18 = sphi 0, %s16
    %s19 = sphi 0, %s17
    %s20 = sphi 0, %s18
    %s21 = sphi 0, %s19
    %s33 = sphi 0, %s35
    %s36 = sphi 0, %s33
    %s37 = sphi 0, %s36
    %s53 = sphi 0, %s37
    %s59 = sphi 0, %s61
    %s62 = sphi 0, %s59
    %s63 = sphi 0, %s62
    %s79 = sphi 0, %s63
    %s83 = sphi 0, %s83
    %s85 = sphi 0, %s83
    %s86 = sphi 0, %s85
    %s100 = sphi 0, %s86
    %s106 = sphi 0, %s108
    %s109 = sphi 0, %s106
    %s110 = sphi 0, %s109
    %s126 = sphi 0, %s110
  $region4: #{tpu_custom_call.1} parent=0 // loop_header_branch
    %12 = sbr.rel (%p10) target = $region8
  $region5: #{tpu_custom_call.1} parent=0 // loop_body
    %s14 = ssub.s32 %s9, 1
    %s15 = ssub.s32 %s9, 2
    %s22 = sadd.s32 1, %s17
    %p23 = scmp.ge.s32.totalorder %s22, 1
    %s24 = scalar_select %p23, 0, %s22
    %s25 = sadd.s32 1, %s16
    %s26 = scalar_select %p23, %s25, %s16
    %p27 = scmp.ge.s32.totalorder %s26, 2
    %s28 = scalar_select %p27, 0, %s26
    %s29 = ssub.s32 %s16, %s28
    %s30 = ssub.s32 %s17, %s24
    %s31 = sor.u32 %s29, %s30
    %p32 = scmp.eq.s32.totalorder %s31, 0
    %s34 = sadd.s32 %s33, 1
    %s35 = scalar_select %p32, %s33, %s34
    %p38 = pneg %p32
    %p39 = scmp.eq.s32.totalorder %s9, 1
    %p40 = por %p38, %p39
    %p41 = scmp.ne.s32.totalorder %s33, %s36
    %p42 = scmp.eq.s32.totalorder %s9, 0
    %p43 = por %p41, %p42
    %p44 = scmp.ne.s32.totalorder %s33, %s36
    %p45 = scmp.eq.s32.totalorder %s14, 1
    %p46 = por %p44, %p45
    %p47 = scmp.ne.s32.totalorder %s36, %s37
    %p48 = scmp.eq.s32.totalorder %s14, 0
    %p49 = por %p47, %p48
    %p50 = scmp.ne.s32.totalorder %s36, %s37
    %p51 = scmp.eq.s32.totalorder %s15, 1
    %p52 = por %p50, %p51
    %p54 = scmp.ne.s32.totalorder %s37, %s53
    %p55 = scmp.eq.s32.totalorder %s15, 0
    %p56 = por %p54, %p55
    %s57 = ssub.s32 %s17, %s24
    %p58 = scmp.eq.s32.totalorder %s57, 0
    %s60 = sadd.s32 %s59, 1
    %s61 = scalar_select %p58, %s59, %s60
    %p64 = pneg %p58
    %p65 = scmp.eq.s32.totalorder %s9, 1
    %p66 = por %p64, %p65
    %p67 = scmp.ne.s32.totalorder %s59, %s62
    %p68 = scmp.eq.s32.totalorder %s9, 0
    %p69 = por %p67, %p68
    %p70 = scmp.ne.s32.totalorder %s59, %s62
    %p71 = scmp.eq.s32.totalorder %s14, 1
    %p72 = por %p70, %p71
    %p73 = scmp.ne.s32.totalorder %s62, %s63
    %p74 = scmp.eq.s32.totalorder %s14, 0
    %p75 = por %p73, %p74
    %p76 = scmp.ne.s32.totalorder %s62, %s63
    %p77 = scmp.eq.s32.totalorder %s15, 1
    %p78 = por %p76, %p77
    %p80 = scmp.ne.s32.totalorder %s63, %s79
    %p81 = scmp.eq.s32.totalorder %s15, 0
    %p82 = por %p80, %p81
    %s84 = sadd.s32 %s83, 1
    %p87 = scmp.eq.s32.totalorder %s9, 1
    %p88 = scmp.ne.s32.totalorder %s83, %s85
    %p89 = scmp.eq.s32.totalorder %s9, 0
    %p90 = por %p88, %p89
    %p91 = scmp.ne.s32.totalorder %s83, %s85
    %p92 = scmp.eq.s32.totalorder %s14, 1
    %p93 = por %p91, %p92
    %p94 = scmp.ne.s32.totalorder %s85, %s86
    %p95 = scmp.eq.s32.totalorder %s14, 0
    %p96 = por %p94, %p95
    %p97 = scmp.ne.s32.totalorder %s85, %s86
    %p98 = scmp.eq.s32.totalorder %s15, 1
    %p99 = por %p97, %p98
    %p101 = scmp.ne.s32.totalorder %s86, %s100
    %p102 = scmp.eq.s32.totalorder %s15, 0
    %p103 = por %p101, %p102
    %s104 = ssub.s32 %s16, %s28
    %p105 = scmp.eq.s32.totalorder %s104, 0
    %s107 = sadd.s32 %s106, 1
    %s108 = scalar_select %p105, %s106, %s107
    %p111 = pneg %p105
    %p112 = scmp.eq.s32.totalorder %s9, 1
    %p113 = por %p111, %p112
    %p114 = scmp.ne.s32.totalorder %s106, %s109
    %p115 = scmp.eq.s32.totalorder %s9, 0
    %p116 = por %p114, %p115
    %p117 = scmp.ne.s32.totalorder %s106, %s109
    %p118 = scmp.eq.s32.totalorder %s14, 1
    %p119 = por %p117, %p118
    %p120 = scmp.ne.s32.totalorder %s109, %s110
    %p121 = scmp.eq.s32.totalorder %s14, 0
    %p122 = por %p120, %p121
    %p123 = scmp.ne.s32.totalorder %s109, %s110
    %p124 = scmp.eq.s32.totalorder %s15, 1
    %p125 = por %p123, %p124
    %p127 = scmp.ne.s32.totalorder %s110, %s126
    %p128 = scmp.eq.s32.totalorder %s15, 0
    %p129 = por %p127, %p128
    %p130 = scmp.le.s32.totalorder 1, %s9
    %p131 = scmp.lt.s32.totalorder %s9, 3
    %p132 = pnand %p130, %p131
    %p133 = pneg %p132
    // Predicated region
    $region9: #{tpu_custom_call.1} parent=5 // pred_check
      _
    $region10: #{tpu_custom_call.1} parent=5 // pred_check_branch
      %135 = sbr.rel (%p132) target = $region12
    $region11: #{tpu_custom_call.1} parent=5 // pred_region
      %s136 = ssub.s32 %s9, 1
      // Predicated region
      $region13: #{tpu_custom_call.1} parent=11 // pred_check
        %p137 = pneg %p75
      $region14: #{tpu_custom_call.1} parent=11 // pred_check_branch
        %139 = sbr.rel (%p137) target = $region16
      $region15: #{tpu_custom_call.1} parent=11 // pred_region
        %s140 = smul.u32 2, %s19
        %p141 = scmp.lt.s32.totalorder %s140, 1
        %s142 = scalar_select %p141, %s140, 1
        %s143 = smul.addr %s142, 8
        %s144 = scalar_lea.vmem %s1, %s143
        %s145 = smul.u32 2, %s19
      $region16: #{tpu_custom_call.1} parent=11 // pred_fallthru
        _
      // Predicated region
      $region17: #{tpu_custom_call.1} parent=11 // pred_check
        %p146 = pneg %p96
      $region18: #{tpu_custom_call.1} parent=11 // pred_check_branch
        %148 = sbr.rel (%p146) target = $region20
      $region19: #{tpu_custom_call.1} parent=11 // pred_region
        _
      $region20: #{tpu_custom_call.1} parent=11 // pred_fallthru
        _
    $region12: #{tpu_custom_call.1} parent=5 // pred_fallthru
      _
    %p149 = scmp.lt.s32.totalorder %s9, 2
    // Predicated region
    $region21: #{tpu_custom_call.1} parent=5 // pred_check
      %p150 = pneg %p149
    $region22: #{tpu_custom_call.1} parent=5 // pred_check_branch
      %152 = sbr.rel (%p150) target = $region24
    $region23: #{tpu_custom_call.1} parent=5 // pred_region
      // Predicated region
      $region25: #{tpu_custom_call.1} parent=23 // pred_check
        %p153 = pneg %p43
      $region26: #{tpu_custom_call.1} parent=23 // pred_check_branch
        %155 = sbr.rel (%p153) target = $region28
      $region27: #{tpu_custom_call.1} parent=23 // pred_region
        %s156 = smul.u32 32, %s16
        %p157 = scmp.lt.s32.totalorder %s156, 63
        %s158 = scalar_select %p157, %s156, 63
        %p159 = scmp.lt.s32.totalorder %s17, 0
        %s160 = scalar_select %p159, %s17, 0
        %s161 = sadd.s32 %s160, %s158
        %s162 = smul.addr %s161, 8
        %s163 = scalar_lea.vmem %s0, %s162
        %s164 = smul.u32 32, %s16
      $region28: #{tpu_custom_call.1} parent=23 // pred_fallthru
        _
    $region24: #{tpu_custom_call.1} parent=5 // pred_fallthru
      _
    %p165 = scmp.le.s32.totalorder 1, %s9
    %p166 = scmp.lt.s32.totalorder %s9, 3
    %p167 = pnand %p165, %p166
    %p168 = pneg %p167
    // Predicated region
    $region29: #{tpu_custom_call.1} parent=5 // pred_check
      _
    $region30: #{tpu_custom_call.1} parent=5 // pred_check_branch
      %170 = sbr.rel (%p167) target = $region32
    $region31: #{tpu_custom_call.1} parent=5 // pred_region
      %s171 = ssub.s32 %s9, 1
      %s172 = smul.u32 32, %s18
      %p173 = scmp.lt.s32.totalorder %s172, 63
      %s174 = scalar_select %p173, %s172, 63
      %p175 = scmp.lt.s32.totalorder %s19, 0
      %s176 = scalar_select %p175, %s19, 0
      %s177 = sadd.s32 %s176, %s174
      %s178 = smul.addr %s177, 8
      %s179 = scalar_lea.vmem %s0, %s178
      %p180 = pneg %p49
      %p181 = pneg %p46
      %s182 = smul.u32 2, %s19
      %p183 = scmp.lt.s32.totalorder %s182, 1
      %s184 = scalar_select %p183, %s182, 1
      %s185 = smul.addr %s184, 8
      %s186 = scalar_lea.vmem %s1, %s185
      %p187 = pneg %p75
      %p188 = pneg %p72
      %p189 = pneg %p96
      %p190 = pneg %p93
      %p191 = pneg %p122
      %p192 = pneg %p119
      %s193 = smul.u32 32, %s18
      %p194 = scmp.lt.s32.totalorder %s193, 63
      %s195 = scalar_select %p194, %s193, 63
      %s196 = smul.addr %s195, 8
      %s197 = scalar_lea.vmem %s3, %s196
      %s198 = smul.u32 32, %s18
      %p199 = scmp.lt.s32.totalorder %s198, 63
      %s200 = scalar_select %p199, %s198, 63
      %p201 = scmp.lt.s32.totalorder %s19, 0
      %s202 = scalar_select %p201, %s19, 0
      %s203 = sadd.s32 %s202, %s200
      %s204 = smul.addr %s203, 8
      %s205 = scalar_lea.vmem %s0, %s204
      %s206 = smul.u32 32, %s18
      %s207 = smul.u32 2, %s19
      %p208 = scmp.lt.s32.totalorder %s207, 1
      %s209 = scalar_select %p208, %s207, 1
      %s210 = smul.addr %s209, 8
      %s211 = scalar_lea.vmem %s1, %s210
      %s212 = smul.u32 2, %s19
      %s213 = smul.u32 32, %s18
      %p214 = scmp.lt.s32.totalorder %s213, 63
      %s215 = scalar_select %p214, %s213, 63
      %s216 = smul.addr %s215, 8
      %s217 = scalar_lea.vmem %s3, %s216
      %s218 = smul.u32 32, %s18
      %p219 = scmp.eq.s32.totalorder %s19, 0
      // Predicated region
      $region33: #{tpu_custom_call.1} parent=31 // pred_check
        %p220 = pneg %p219
      $region34: #{tpu_custom_call.1} parent=31 // pred_check_branch
        %222 = sbr.rel (%p220) target = $region36
      $region35: #{tpu_custom_call.1} parent=31 // pred_region
        %vm223 = vcmask 523264
        %224 = vst.msk [vmem:[#allocation2] sm:$0xff] %vm223, 0.0
        %225 = vst.msk [vmem:[#allocation2 + $0x8] sm:$0xff] %vm223, 0.0
        %226 = vst.msk [vmem:[#allocation2 + $0x10] sm:$0xff] %vm223, 0.0
        %227 = vst.msk [vmem:[#allocation2 + $0x18] sm:$0xff] %vm223, 0.0
        %228 = vst.msk [vmem:[#allocation2 + $0x20] sm:$0xff] %vm223, 0.0
        %229 = vst.msk [vmem:[#allocation2 + $0x28] sm:$0xff] %vm223, 0.0
        %230 = vst.msk [vmem:[#allocation2 + $0x30] sm:$0xff] %vm223, 0.0
        %231 = vst.msk [vmem:[#allocation2 + $0x38] sm:$0xff] %vm223, 0.0
        %232 = vst.msk [vmem:[#allocation2 + $0x40] sm:$0xff] %vm223, 0.0
        %233 = vst.msk [vmem:[#allocation2 + $0x48] sm:$0xff] %vm223, 0.0
        %234 = vst.msk [vmem:[#allocation2 + $0x50] sm:$0xff] %vm223, 0.0
        %235 = vst.msk [vmem:[#allocation2 + $0x58] sm:$0xff] %vm223, 0.0
        %236 = vst.msk [vmem:[#allocation2 + $0x60] sm:$0xff] %vm223, 0.0
        %237 = vst.msk [vmem:[#allocation2 + $0x68] sm:$0xff] %vm223, 0.0
        %238 = vst.msk [vmem:[#allocation2 + $0x70] sm:$0xff] %vm223, 0.0
        %239 = vst.msk [vmem:[#allocation2 + $0x78] sm:$0xff] %vm223, 0.0
        %240 = vst.msk [vmem:[#allocation2 + $0x80] sm:$0xff] %vm223, 0.0
        %241 = vst.msk [vmem:[#allocation2 + $0x88] sm:$0xff] %vm223, 0.0
        %242 = vst.msk [vmem:[#allocation2 + $0x90] sm:$0xff] %vm223, 0.0
        %243 = vst.msk [vmem:[#allocation2 + $0x98] sm:$0xff] %vm223, 0.0
        %244 = vst.msk [vmem:[#allocation2 + $0xa0] sm:$0xff] %vm223, 0.0
        %245 = vst.msk [vmem:[#allocation2 + $0xa8] sm:$0xff] %vm223, 0.0
        %246 = vst.msk [vmem:[#allocation2 + $0xb0] sm:$0xff] %vm223, 0.0
        %247 = vst.msk [vmem:[#allocation2 + $0xb8] sm:$0xff] %vm223, 0.0
        %248 = vst.msk [vmem:[#allocation2 + $0xc0] sm:$0xff] %vm223, 0.0
        %249 = vst.msk [vmem:[#allocation2 + $0xc8] sm:$0xff] %vm223, 0.0
        %250 = vst.msk [vmem:[#allocation2 + $0xd0] sm:$0xff] %vm223, 0.0
        %251 = vst.msk [vmem:[#allocation2 + $0xd8] sm:$0xff] %vm223, 0.0
        %252 = vst.msk [vmem:[#allocation2 + $0xe0] sm:$0xff] %vm223, 0.0
        %253 = vst.msk [vmem:[#allocation2 + $0xe8] sm:$0xff] %vm223, 0.0
        %254 = vst.msk [vmem:[#allocation2 + $0xf0] sm:$0xff] %vm223, 0.0
        %255 = vst.msk [vmem:[#allocation2 + $0xf8] sm:$0xff] %vm223, 0.0
      $region36: #{tpu_custom_call.1} parent=31 // pred_fallthru
        _
      %v256 = vld [vmem:[#allocation2] sm:$0xff]
      %v257 = vld [vmem:[#allocation2 + $0x8] sm:$0xff]
      %v258 = vld [vmem:[#allocation2 + $0x10] sm:$0xff]
      %v259 = vld [vmem:[#allocation2 + $0x18] sm:$0xff]
      %v260 = vld [vmem:[#allocation2 + $0x20] sm:$0xff]
      %v261 = vld [vmem:[#allocation2 + $0x28] sm:$0xff]
      %v262 = vld [vmem:[#allocation2 + $0x30] sm:$0xff]
      %v263 = vld [vmem:[#allocation2 + $0x38] sm:$0xff]
      %v264 = vld [vmem:[#allocation2 + $0x40] sm:$0xff]
      %v265 = vld [vmem:[#allocation2 + $0x48] sm:$0xff]
      %v266 = vld [vmem:[#allocation2 + $0x50] sm:$0xff]
      %v267 = vld [vmem:[#allocation2 + $0x58] sm:$0xff]
      %v268 = vld [vmem:[#allocation2 + $0x60] sm:$0xff]
      %v269 = vld [vmem:[#allocation2 + $0x68] sm:$0xff]
      %v270 = vld [vmem:[#allocation2 + $0x70] sm:$0xff]
      %v271 = vld [vmem:[#allocation2 + $0x78] sm:$0xff]
      %v272 = vld [vmem:[#allocation2 + $0x80] sm:$0xff]
      %v273 = vld [vmem:[#allocation2 + $0x88] sm:$0xff]
      %v274 = vld [vmem:[#allocation2 + $0x90] sm:$0xff]
      %v275 = vld [vmem:[#allocation2 + $0x98] sm:$0xff]
      %v276 = vld [vmem:[#allocation2 + $0xa0] sm:$0xff]
      %v277 = vld [vmem:[#allocation2 + $0xa8] sm:$0xff]
      %v278 = vld [vmem:[#allocation2 + $0xb0] sm:$0xff]
      %v279 = vld [vmem:[#allocation2 + $0xb8] sm:$0xff]
      %v280 = vld [vmem:[#allocation2 + $0xc0] sm:$0xff]
      %v281 = vld [vmem:[#allocation2 + $0xc8] sm:$0xff]
      %v282 = vld [vmem:[#allocation2 + $0xd0] sm:$0xff]
      %v283 = vld [vmem:[#allocation2 + $0xd8] sm:$0xff]
      %v284 = vld [vmem:[#allocation2 + $0xe0] sm:$0xff]
      %v285 = vld [vmem:[#allocation2 + $0xe8] sm:$0xff]
      %v286 = vld [vmem:[#allocation2 + $0xf0] sm:$0xff]
      %v287 = vld [vmem:[#allocation2 + $0xf8] sm:$0xff]
      %v288 = vld [vmem:[%s205] sm:$0xff]
      %v289 = vld [vmem:[%s205 + $0x8] sm:$0xff]
      %v290 = vld [vmem:[%s205 + $0x10] sm:$0xff]
      %v291 = vld [vmem:[%s205 + $0x18] sm:$0xff]
      %v292 = vld [vmem:[%s205 + $0x20] sm:$0xff]
      %v293 = vld [vmem:[%s205 + $0x28] sm:$0xff]
      %v294 = vld [vmem:[%s205 + $0x30] sm:$0xff]
      %v295 = vld [vmem:[%s205 + $0x38] sm:$0xff]
      %v296 = vld [vmem:[%s205 + $0x40] sm:$0xff]
      %v297 = vld [vmem:[%s205 + $0x48] sm:$0xff]
      %v298 = vld [vmem:[%s205 + $0x50] sm:$0xff]
      %v299 = vld [vmem:[%s205 + $0x58] sm:$0xff]
      %v300 = vld [vmem:[%s205 + $0x60] sm:$0xff]
      %v301 = vld [vmem:[%s205 + $0x68] sm:$0xff]
      %v302 = vld [vmem:[%s205 + $0x70] sm:$0xff]
      %v303 = vld [vmem:[%s205 + $0x78] sm:$0xff]
      %v304 = vld [vmem:[%s205 + $0x80] sm:$0xff]
      %v305 = vld [vmem:[%s205 + $0x88] sm:$0xff]
      %v306 = vld [vmem:[%s205 + $0x90] sm:$0xff]
      %v307 = vld [vmem:[%s205 + $0x98] sm:$0xff]
      %v308 = vld [vmem:[%s205 + $0xa0] sm:$0xff]
      %v309 = vld [vmem:[%s205 + $0xa8] sm:$0xff]
      %v310 = vld [vmem:[%s205 + $0xb0] sm:$0xff]
      %v311 = vld [vmem:[%s205 + $0xb8] sm:$0xff]
      %v312 = vld [vmem:[%s205 + $0xc0] sm:$0xff]
      %v313 = vld [vmem:[%s205 + $0xc8] sm:$0xff]
      %v314 = vld [vmem:[%s205 + $0xd0] sm:$0xff]
      %v315 = vld [vmem:[%s205 + $0xd8] sm:$0xff]
      %v316 = vld [vmem:[%s205 + $0xe0] sm:$0xff]
      %v317 = vld [vmem:[%s205 + $0xe8] sm:$0xff]
      %v318 = vld [vmem:[%s205 + $0xf0] sm:$0xff]
      %v319 = vld [vmem:[%s205 + $0xf8] sm:$0xff]
      %v320 = vld [vmem:[%s211] sm:$0xff]
      %v321 = vld [vmem:[%s211 + $0x8] sm:$0xff]
      %vm322 = vcmask 130048
      %v324 = vsel %vm322, %v288, 0
      %v327 = vsel %vm322, %v289, 0
      %v330 = vsel %vm322, %v290, 0
      %v333 = vsel %vm322, %v291, 0
      %v336 = vsel %vm322, %v292, 0
      %v339 = vsel %vm322, %v293, 0
      %v342 = vsel %vm322, %v294, 0
      %v345 = vsel %vm322, %v295, 0
      %v348 = vsel %vm322, %v296, 0
      %v351 = vsel %vm322, %v297, 0
      %v354 = vsel %vm322, %v298, 0
      %v357 = vsel %vm322, %v299, 0
      %v360 = vsel %vm322, %v300, 0
      %v363 = vsel %vm322, %v301, 0
      %v366 = vsel %vm322, %v302, 0
      %v369 = vsel %vm322, %v303, 0
      %v372 = vsel %vm322, %v304, 0
      %v375 = vsel %vm322, %v305, 0
      %v378 = vsel %vm322, %v306, 0
      %v381 = vsel %vm322, %v307, 0
      %v384 = vsel %vm322, %v308, 0
      %v387 = vsel %vm322, %v309, 0
      %v390 = vsel %vm322, %v310, 0
      %v393 = vsel %vm322, %v311, 0
      %v396 = vsel %vm322, %v312, 0
      %v399 = vsel %vm322, %v313, 0
      %v402 = vsel %vm322, %v314, 0
      %v405 = vsel %vm322, %v315, 0
      %v408 = vsel %vm322, %v316, 0
      %v411 = vsel %vm322, %v317, 0
      %v414 = vsel %vm322, %v318, 0
      %v417 = vsel %vm322, %v319, 0
      %419 = vmatprep.subr.mxu0 0.0
      %420 = vmatpush1.msra.mxu0 %v320
      %421 = vmatprep.subr.mxu0 0.0
      %422 = vmatpush1.msra.mxu0 %v321
      %423 = vmatprep.subr.mxu0 0.0
      %424 = vmatpush1.msra.mxu0 0.0
      %425 = vmatprep.subr.mxu0 0.0
      %426 = vmatpush1.msra.mxu0 0.0
      %427 = vmatprep.subr.mxu0 0.0
      %428 = vmatpush1.msra.mxu0 0.0
      %429 = vmatprep.subr.mxu0 0.0
      %430 = vmatpush1.msra.mxu0 0.0
      %431 = vmatprep.subr.mxu0 0.0
      %432 = vmatpush1.msra.mxu0 0.0
      %433 = vmatprep.subr.mxu0 0.0
      %434 = vmatpush1.msra.mxu0 0.0
      %435 = vmatprep.subr.mxu0 0.0
      %436 = vmatpush1.msra.mxu0 0.0
      %437 = vmatprep.subr.mxu0 0.0
      %438 = vmatpush1.msra.mxu0 0.0
      %439 = vmatprep.subr.mxu0 0.0
      %440 = vmatpush1.msra.mxu0 0.0
      %441 = vmatprep.subr.mxu0 0.0
      %442 = vmatpush1.msra.mxu0 0.0
      %443 = vmatprep.subr.mxu0 0.0
      %444 = vmatpush1.msra.mxu0 0.0
      %445 = vmatprep.subr.mxu0 0.0
      %446 = vmatpush1.msra.mxu0 0.0
      %447 = vmatprep.subr.mxu0 0.0
      %448 = vmatpush1.msra.mxu0 0.0
      %449 = vmatprep.subr.mxu0 0.0
      %450 = vmatpush1.msra.mxu0 0.0
      %451 = vmatprep.subr.mxu0 0.0
      %452 = vmatpush1.msra.mxu0 0.0
      %453 = vmatprep.subr.mxu0 0.0
      %454 = vmatpush1.msra.mxu0 0.0
      %455 = vmatprep.subr.mxu0 0.0
      %456 = vmatpush1.msra.mxu0 0.0
      %457 = vmatprep.subr.mxu0 0.0
      %458 = vmatpush1.msra.mxu0 0.0
      %459 = vmatprep.subr.mxu0 0.0
      %460 = vmatpush1.msra.mxu0 0.0
      %461 = vmatprep.subr.mxu0 0.0
      %462 = vmatpush1.msra.mxu0 0.0
      %463 = vmatprep.subr.mxu0 0.0
      %464 = vmatpush1.msra.mxu0 0.0
      %465 = vmatprep.subr.mxu0 0.0
      %466 = vmatpush1.msra.mxu0 0.0
      %467 = vmatprep.subr.mxu0 0.0
      %468 = vmatpush1.msra.mxu0 0.0
      %469 = vmatprep.subr.mxu0 0.0
      %470 = vmatpush1.msra.mxu0 0.0
      %471 = vmatprep.subr.mxu0 0.0
      %472 = vmatpush1.msra.mxu0 0.0
      %473 = vmatprep.subr.mxu0 0.0
      %474 = vmatpush1.msra.mxu0 0.0
      %475 = vmatprep.subr.mxu0 0.0
      %476 = vmatpush1.msra.mxu0 0.0
      %477 = vmatprep.subr.mxu0 0.0
      %478 = vmatpush1.msra.mxu0 0.0
      %479 = vmatprep.subr.mxu0 0.0
      %480 = vmatpush1.msra.mxu0 0.0
      %481 = vmatprep.subr.mxu0 0.0
      %482 = vmatpush1.msra.mxu0 0.0
      %483 = vmatprep.mubr.f32.mxu0 0.0
      %484 = vmatmul.mubr.f32.gmra.mrb[0].mxu0 %v324
      %v485 = vpop.f32.mrb[0].mxu0
      %v486 = vadd.f32 0.0, %v485
      %v487 = vpop.f32.mrb[0].mxu0
      %488 = vmatprep.mubr.f32.mxu0 0.0
      %489 = vmatmul.mubr.f32.gmra.mrb[0].mxu0 %v327
      %v490 = vpop.f32.mrb[0].mxu0
      %v491 = vadd.f32 0.0, %v490
      %v492 = vpop.f32.mrb[0].mxu0
      %493 = vmatprep.mubr.f32.mxu0 0.0
      %494 = vmatmul.mubr.f32.gmra.mrb[0].mxu0 %v330
      %v495 = vpop.f32.mrb[0].mxu0
      %v496 = vadd.f32 0.0, %v495
      %v497 = vpop.f32.mrb[0].mxu0
      %498 = vmatprep.mubr.f32.mxu0 0.0
      %499 = vmatmul.mubr.f32.gmra.mrb[0].mxu0 %v333
      %v500 = vpop.f32.mrb[0].mxu0
      %v501 = vadd.f32 0.0, %v500
      %v502 = vpop.f32.mrb[0].mxu0
      %503 = vmatprep.mubr.f32.mxu0 0.0
      %504 = vmatmul.mubr.f32.gmra.mrb[0].mxu0 %v336
      %v505 = vpop.f32.mrb[0].mxu0
      %v506 = vadd.f32 0.0, %v505
      %v507 = vpop.f32.mrb[0].mxu0
      %508 = vmatprep.mubr.f32.mxu0 0.0
      %509 = vmatmul.mubr.f32.gmra.mrb[0].mxu0 %v339
      %v510 = vpop.f32.mrb[0].mxu0
      %v511 = vadd.f32 0.0, %v510
      %v512 = vpop.f32.mrb[0].mxu0
      %513 = vmatprep.mubr.f32.mxu0 0.0
      %514 = vmatmul.mubr.f32.gmra.mrb[0].mxu0 %v342
      %v515 = vpop.f32.mrb[0].mxu0
      %v516 = vadd.f32 0.0, %v515
      %v517 = vpop.f32.mrb[0].mxu0
      %518 = vmatprep.mubr.f32.mxu0 0.0
      %519 = vmatmul.mubr.f32.gmra.mrb[0].mxu0 %v345
      %v520 = vpop.f32.mrb[0].mxu0
      %v521 = vadd.f32 0.0, %v520
      %v522 = vpop.f32.mrb[0].mxu0
      %523 = vmatprep.mubr.f32.mxu0 0.0
      %524 = vmatmul.mubr.f32.gmra.mrb[0].mxu0 %v348
      %v525 = vpop.f32.mrb[0].mxu0
      %v526 = vadd.f32 0.0, %v525
      %v527 = vpop.f32.mrb[0].mxu0
      %528 = vmatprep.mubr.f32.mxu0 0.0
      %529 = vmatmul.mubr.f32.gmra.mrb[0].mxu0 %v351
      %v530 = vpop.f32.mrb[0].mxu0
      %v531 = vadd.f32 0.0, %v530
      %v532 = vpop.f32.mrb[0].mxu0
      %533 = vmatprep.mubr.f32.mxu0 0.0
      %534 = vmatmul.mubr.f32.gmra.mrb[0].mxu0 %v354
      %v535 = vpop.f32.mrb[0].mxu0
      %v536 = vadd.f32 0.0, %v535
      %v537 = vpop.f32.mrb[0].mxu0
      %538 = vmatprep.mubr.f32.mxu0 0.0
      %539 = vmatmul.mubr.f32.gmra.mrb[0].mxu0 %v357
      %v540 = vpop.f32.mrb[0].mxu0
      %v541 = vadd.f32 0.0, %v540
      %v542 = vpop.f32.mrb[0].mxu0
      %543 = vmatprep.mubr.f32.mxu0 0.0
      %544 = vmatmul.mubr.f32.gmra.mrb[0].mxu0 %v360
      %v545 = vpop.f32.mrb[0].mxu0
      %v546 = vadd.f32 0.0, %v545
      %v547 = vpop.f32.mrb[0].mxu0
      %548 = vmatprep.mubr.f32.mxu0 0.0
      %549 = vmatmul.mubr.f32.gmra.mrb[0].mxu0 %v363
      %v550 = vpop.f32.mrb[0].mxu0
      %v551 = vadd.f32 0.0, %v550
      %v552 = vpop.f32.mrb[0].mxu0
      %553 = vmatprep.mubr.f32.mxu0 0.0
      %554 = vmatmul.mubr.f32.gmra.mrb[0].mxu0 %v366
      %v555 = vpop.f32.mrb[0].mxu0
      %v556 = vadd.f32 0.0, %v555
      %v557 = vpop.f32.mrb[0].mxu0
      %558 = vmatprep.mubr.f32.mxu0 0.0
      %559 = vmatmul.mubr.f32.gmra.mrb[0].mxu0 %v369
      %v560 = vpop.f32.mrb[0].mxu0
      %v561 = vadd.f32 0.0, %v560
      %v562 = vpop.f32.mrb[0].mxu0
      %563 = vmatprep.mubr.f32.mxu0 0.0
      %564 = vmatmul.mubr.f32.gmra.mrb[0].mxu0 %v372
      %v565 = vpop.f32.mrb[0].mxu0
      %v566 = vadd.f32 0.0, %v565
      %v567 = vpop.f32.mrb[0].mxu0
      %568 = vmatprep.mubr.f32.mxu0 0.0
      %569 = vmatmul.mubr.f32.gmra.mrb[0].mxu0 %v375
      %v570 = vpop.f32.mrb[0].mxu0
      %v571 = vadd.f32 0.0, %v570
      %v572 = vpop.f32.mrb[0].mxu0
      %573 = vmatprep.mubr.f32.mxu0 0.0
      %574 = vmatmul.mubr.f32.gmra.mrb[0].mxu0 %v378
      %v575 = vpop.f32.mrb[0].mxu0
      %v576 = vadd.f32 0.0, %v575
      %v577 = vpop.f32.mrb[0].mxu0
      %578 = vmatprep.mubr.f32.mxu0 0.0
      %579 = vmatmul.mubr.f32.gmra.mrb[0].mxu0 %v381
      %v580 = vpop.f32.mrb[0].mxu0
      %v581 = vadd.f32 0.0, %v580
      %v582 = vpop.f32.mrb[0].mxu0
      %583 = vmatprep.mubr.f32.mxu0 0.0
      %584 = vmatmul.mubr.f32.gmra.mrb[0].mxu0 %v384
      %v585 = vpop.f32.mrb[0].mxu0
      %v586 = vadd.f32 0.0, %v585
      %v587 = vpop.f32.mrb[0].mxu0
      %588 = vmatprep.mubr.f32.mxu0 0.0
      %589 = vmatmul.mubr.f32.gmra.mrb[0].mxu0 %v387
      %v590 = vpop.f32.mrb[0].mxu0
      %v591 = vadd.f32 0.0, %v590
      %v592 = vpop.f32.mrb[0].mxu0
      %593 = vmatprep.mubr.f32.mxu0 0.0
      %594 = vmatmul.mubr.f32.gmra.mrb[0].mxu0 %v390
      %v595 = vpop.f32.mrb[0].mxu0
      %v596 = vadd.f32 0.0, %v595
      %v597 = vpop.f32.mrb[0].mxu0
      %598 = vmatprep.mubr.f32.mxu0 0.0
      %599 = vmatmul.mubr.f32.gmra.mrb[0].mxu0 %v393
      %v600 = vpop.f32.mrb[0].mxu0
      %v601 = vadd.f32 0.0, %v600
      %v602 = vpop.f32.mrb[0].mxu0
      %603 = vmatprep.mubr.f32.mxu0 0.0
      %604 = vmatmul.mubr.f32.gmra.mrb[0].mxu0 %v396
      %v605 = vpop.f32.mrb[0].mxu0
      %v606 = vadd.f32 0.0, %v605
      %v607 = vpop.f32.mrb[0].mxu0
      %608 = vmatprep.mubr.f32.mxu0 0.0
      %609 = vmatmul.mubr.f32.gmra.mrb[0].mxu0 %v399
      %v610 = vpop.f32.mrb[0].mxu0
      %v611 = vadd.f32 0.0, %v610
      %v612 = vpop.f32.mrb[0].mxu0
      %613 = vmatprep.mubr.f32.mxu0 0.0
      %614 = vmatmul.mubr.f32.gmra.mrb[0].mxu0 %v402
      %v615 = vpop.f32.mrb[0].mxu0
      %v616 = vadd.f32 0.0, %v615
      %v617 = vpop.f32.mrb[0].mxu0
      %618 = vmatprep.mubr.f32.mxu0 0.0
      %619 = vmatmul.mubr.f32.gmra.mrb[0].mxu0 %v405
      %v620 = vpop.f32.mrb[0].mxu0
      %v621 = vadd.f32 0.0, %v620
      %v622 = vpop.f32.mrb[0].mxu0
      %623 = vmatprep.mubr.f32.mxu0 0.0
      %624 = vmatmul.mubr.f32.gmra.mrb[0].mxu0 %v408
      %v625 = vpop.f32.mrb[0].mxu0
      %v626 = vadd.f32 0.0, %v625
      %v627 = vpop.f32.mrb[0].mxu0
      %628 = vmatprep.mubr.f32.mxu0 0.0
      %629 = vmatmul.mubr.f32.gmra.mrb[0].mxu0 %v411
      %v630 = vpop.f32.mrb[0].mxu0
      %v631 = vadd.f32 0.0, %v630
      %v632 = vpop.f32.mrb[0].mxu0
      %633 = vmatprep.mubr.f32.mxu0 0.0
      %634 = vmatmul.mubr.f32.gmra.mrb[0].mxu0 %v414
      %v635 = vpop.f32.mrb[0].mxu0
      %v636 = vadd.f32 0.0, %v635
      %v637 = vpop.f32.mrb[0].mxu0
      %638 = vmatprep.mubr.f32.mxu0 0.0
      %639 = vmatmul.mubr.f32.gmra.mrb[0].mxu0 %v417
      %v640 = vpop.f32.mrb[0].mxu0
      %v641 = vadd.f32 0.0, %v640
      %v642 = vpop.f32.mrb[0].mxu0
      %643 = vdwg.mxu0
      %v644 = vadd.f32 %v256, %v486
      %v645 = vadd.f32 %v257, %v491
      %v646 = vadd.f32 %v258, %v496
      %v647 = vadd.f32 %v259, %v501
      %v648 = vadd.f32 %v260, %v506
      %v649 = vadd.f32 %v261, %v511
      %v650 = vadd.f32 %v262, %v516
      %v651 = vadd.f32 %v263, %v521
      %v652 = vadd.f32 %v264, %v526
      %v653 = vadd.f32 %v265, %v531
      %v654 = vadd.f32 %v266, %v536
      %v655 = vadd.f32 %v267, %v541
      %v656 = vadd.f32 %v268, %v546
      %v657 = vadd.f32 %v269, %v551
      %v658 = vadd.f32 %v270, %v556
      %v659 = vadd.f32 %v271, %v561
      %v660 = vadd.f32 %v272, %v566
      %v661 = vadd.f32 %v273, %v571
      %v662 = vadd.f32 %v274, %v576
      %v663 = vadd.f32 %v275, %v581
      %v664 = vadd.f32 %v276, %v586
      %v665 = vadd.f32 %v277, %v591
      %v666 = vadd.f32 %v278, %v596
      %v667 = vadd.f32 %v279, %v601
      %v668 = vadd.f32 %v280, %v606
      %v669 = vadd.f32 %v281, %v611
      %v670 = vadd.f32 %v282, %v616
      %v671 = vadd.f32 %v283, %v621
      %v672 = vadd.f32 %v284, %v626
      %v673 = vadd.f32 %v285, %v631
      %v674 = vadd.f32 %v286, %v636
      %v675 = vadd.f32 %v287, %v641
      %vm676 = vcmask 523264
      %677 = vst.msk [vmem:[#allocation2] sm:$0xff] %vm676, %v644
      %678 = vst.msk [vmem:[#allocation2 + $0x8] sm:$0xff] %vm676, %v645
      %679 = vst.msk [vmem:[#allocation2 + $0x10] sm:$0xff] %vm676, %v646
      %680 = vst.msk [vmem:[#allocation2 + $0x18] sm:$0xff] %vm676, %v647
      %681 = vst.msk [vmem:[#allocation2 + $0x20] sm:$0xff] %vm676, %v648
      %682 = vst.msk [vmem:[#allocation2 + $0x28] sm:$0xff] %vm676, %v649
      %683 = vst.msk [vmem:[#allocation2 + $0x30] sm:$0xff] %vm676, %v650
      %684 = vst.msk [vmem:[#allocation2 + $0x38] sm:$0xff] %vm676, %v651
      %685 = vst.msk [vmem:[#allocation2 + $0x40] sm:$0xff] %vm676, %v652
      %686 = vst.msk [vmem:[#allocation2 + $0x48] sm:$0xff] %vm676, %v653
      %687 = vst.msk [vmem:[#allocation2 + $0x50] sm:$0xff] %vm676, %v654
      %688 = vst.msk [vmem:[#allocation2 + $0x58] sm:$0xff] %vm676, %v655
      %689 = vst.msk [vmem:[#allocation2 + $0x60] sm:$0xff] %vm676, %v656
      %690 = vst.msk [vmem:[#allocation2 + $0x68] sm:$0xff] %vm676, %v657
      %691 = vst.msk [vmem:[#allocation2 + $0x70] sm:$0xff] %vm676, %v658
      %692 = vst.msk [vmem:[#allocation2 + $0x78] sm:$0xff] %vm676, %v659
      %693 = vst.msk [vmem:[#allocation2 + $0x80] sm:$0xff] %vm676, %v660
      %694 = vst.msk [vmem:[#allocation2 + $0x88] sm:$0xff] %vm676, %v661
      %695 = vst.msk [vmem:[#allocation2 + $0x90] sm:$0xff] %vm676, %v662
      %696 = vst.msk [vmem:[#allocation2 + $0x98] sm:$0xff] %vm676, %v663
      %697 = vst.msk [vmem:[#allocation2 + $0xa0] sm:$0xff] %vm676, %v664
      %698 = vst.msk [vmem:[#allocation2 + $0xa8] sm:$0xff] %vm676, %v665
      %699 = vst.msk [vmem:[#allocation2 + $0xb0] sm:$0xff] %vm676, %v666
      %700 = vst.msk [vmem:[#allocation2 + $0xb8] sm:$0xff] %vm676, %v667
      %701 = vst.msk [vmem:[#allocation2 + $0xc0] sm:$0xff] %vm676, %v668
      %702 = vst.msk [vmem:[#allocation2 + $0xc8] sm:$0xff] %vm676, %v669
      %703 = vst.msk [vmem:[#allocation2 + $0xd0] sm:$0xff] %vm676, %v670
      %704 = vst.msk [vmem:[#allocation2 + $0xd8] sm:$0xff] %vm676, %v671
      %705 = vst.msk [vmem:[#allocation2 + $0xe0] sm:$0xff] %vm676, %v672
      %706 = vst.msk [vmem:[#allocation2 + $0xe8] sm:$0xff] %vm676, %v673
      %707 = vst.msk [vmem:[#allocation2 + $0xf0] sm:$0xff] %vm676, %v674
      %708 = vst.msk [vmem:[#allocation2 + $0xf8] sm:$0xff] %vm676, %v675
      // Predicated region
      $region37: #{tpu_custom_call.1} parent=31 // pred_check
        %p709 = pneg %p219
      $region38: #{tpu_custom_call.1} parent=31 // pred_check_branch
        %711 = sbr.rel (%p709) target = $region40
      $region39: #{tpu_custom_call.1} parent=31 // pred_region
        %v712 = vld [vmem:[#allocation2] sm:$0xff]
        %v713 = vld [vmem:[#allocation2 + $0x8] sm:$0xff]
        %v714 = vld [vmem:[#allocation2 + $0x10] sm:$0xff]
        %v715 = vld [vmem:[#allocation2 + $0x18] sm:$0xff]
        %v716 = vld [vmem:[#allocation2 + $0x20] sm:$0xff]
        %v717 = vld [vmem:[#allocation2 + $0x28] sm:$0xff]
        %v718 = vld [vmem:[#allocation2 + $0x30] sm:$0xff]
        %v719 = vld [vmem:[#allocation2 + $0x38] sm:$0xff]
        %v720 = vld [vmem:[#allocation2 + $0x40] sm:$0xff]
        %v721 = vld [vmem:[#allocation2 + $0x48] sm:$0xff]
        %v722 = vld [vmem:[#allocation2 + $0x50] sm:$0xff]
        %v723 = vld [vmem:[#allocation2 + $0x58] sm:$0xff]
        %v724 = vld [vmem:[#allocation2 + $0x60] sm:$0xff]
        %v725 = vld [vmem:[#allocation2 + $0x68] sm:$0xff]
        %v726 = vld [vmem:[#allocation2 + $0x70] sm:$0xff]
        %v727 = vld [vmem:[#allocation2 + $0x78] sm:$0xff]
        %v728 = vld [vmem:[#allocation2 + $0x80] sm:$0xff]
        %v729 = vld [vmem:[#allocation2 + $0x88] sm:$0xff]
        %v730 = vld [vmem:[#allocation2 + $0x90] sm:$0xff]
        %v731 = vld [vmem:[#allocation2 + $0x98] sm:$0xff]
        %v732 = vld [vmem:[#allocation2 + $0xa0] sm:$0xff]
        %v733 = vld [vmem:[#allocation2 + $0xa8] sm:$0xff]
        %v734 = vld [vmem:[#allocation2 + $0xb0] sm:$0xff]
        %v735 = vld [vmem:[#allocation2 + $0xb8] sm:$0xff]
        %v736 = vld [vmem:[#allocation2 + $0xc0] sm:$0xff]
        %v737 = vld [vmem:[#allocation2 + $0xc8] sm:$0xff]
        %v738 = vld [vmem:[#allocation2 + $0xd0] sm:$0xff]
        %v739 = vld [vmem:[#allocation2 + $0xd8] sm:$0xff]
        %v740 = vld [vmem:[#allocation2 + $0xe0] sm:$0xff]
        %v741 = vld [vmem:[#allocation2 + $0xe8] sm:$0xff]
        %v742 = vld [vmem:[#allocation2 + $0xf0] sm:$0xff]
        %v743 = vld [vmem:[#allocation2 + $0xf8] sm:$0xff]
        %v744 = vld [vmem:[%s2] sm:$0x1]
        %v746 = vlaneseq
        %v747 = vshrl.u32 %v746, 7
        %v748 = vsub.s32 0, %v747
        %v749 = vrot.slane %v744, %v748
        %v751 = vadd.f32 %v712, %v749
        %v752 = vadd.f32 %v713, %v749
        %v753 = vadd.f32 %v714, %v749
        %v754 = vadd.f32 %v715, %v749
        %v755 = vadd.f32 %v716, %v749
        %v756 = vadd.f32 %v717, %v749
        %v757 = vadd.f32 %v718, %v749
        %v758 = vadd.f32 %v719, %v749
        %v759 = vadd.f32 %v720, %v749
        %v760 = vadd.f32 %v721, %v749
        %v761 = vadd.f32 %v722, %v749
        %v762 = vadd.f32 %v723, %v749
        %v763 = vadd.f32 %v724, %v749
        %v764 = vadd.f32 %v725, %v749
        %v765 = vadd.f32 %v726, %v749
        %v766 = vadd.f32 %v727, %v749
        %v767 = vadd.f32 %v728, %v749
        %v768 = vadd.f32 %v729, %v749
        %v769 = vadd.f32 %v730, %v749
        %v770 = vadd.f32 %v731, %v749
        %v771 = vadd.f32 %v732, %v749
        %v772 = vadd.f32 %v733, %v749
        %v773 = vadd.f32 %v734, %v749
        %v774 = vadd.f32 %v735, %v749
        %v775 = vadd.f32 %v736, %v749
        %v776 = vadd.f32 %v737, %v749
        %v777 = vadd.f32 %v738, %v749
        %v778 = vadd.f32 %v739, %v749
        %v779 = vadd.f32 %v740, %v749
        %v780 = vadd.f32 %v741, %v749
        %v781 = vadd.f32 %v742, %v749
        %v782 = vadd.f32 %v743, %v749
        %783 = vst.msk [vmem:[%s217] sm:$0xff] %vm676, %v751
        %784 = vst.msk [vmem:[%s217 + $0x8] sm:$0xff] %vm676, %v752
        %785 = vst.msk [vmem:[%s217 + $0x10] sm:$0xff] %vm676, %v753
        %786 = vst.msk [vmem:[%s217 + $0x18] sm:$0xff] %vm676, %v754
        %787 = vst.msk [vmem:[%s217 + $0x20] sm:$0xff] %vm676, %v755
        %788 = vst.msk [vmem:[%s217 + $0x28] sm:$0xff] %vm676, %v756
        %789 = vst.msk [vmem:[%s217 + $0x30] sm:$0xff] %vm676, %v757
        %790 = vst.msk [vmem:[%s217 + $0x38] sm:$0xff] %vm676, %v758
        %791 = vst.msk [vmem:[%s217 + $0x40] sm:$0xff] %vm676, %v759
        %792 = vst.msk [vmem:[%s217 + $0x48] sm:$0xff] %vm676, %v760
        %793 = vst.msk [vmem:[%s217 + $0x50] sm:$0xff] %vm676, %v761
        %794 = vst.msk [vmem:[%s217 + $0x58] sm:$0xff] %vm676, %v762
        %795 = vst.msk [vmem:[%s217 + $0x60] sm:$0xff] %vm676, %v763
        %796 = vst.msk [vmem:[%s217 + $0x68] sm:$0xff] %vm676, %v764
        %797 = vst.msk [vmem:[%s217 + $0x70] sm:$0xff] %vm676, %v765
        %798 = vst.msk [vmem:[%s217 + $0x78] sm:$0xff] %vm676, %v766
        %799 = vst.msk [vmem:[%s217 + $0x80] sm:$0xff] %vm676, %v767
        %800 = vst.msk [vmem:[%s217 + $0x88] sm:$0xff] %vm676, %v768
        %801 = vst.msk [vmem:[%s217 + $0x90] sm:$0xff] %vm676, %v769
        %802 = vst.msk [vmem:[%s217 + $0x98] sm:$0xff] %vm676, %v770
        %803 = vst.msk [vmem:[%s217 + $0xa0] sm:$0xff] %vm676, %v771
        %804 = vst.msk [vmem:[%s217 + $0xa8] sm:$0xff] %vm676, %v772
        %805 = vst.msk [vmem:[%s217 + $0xb0] sm:$0xff] %vm676, %v773
        %806 = vst.msk [vmem:[%s217 + $0xb8] sm:$0xff] %vm676, %v774
        %807 = vst.msk [vmem:[%s217 + $0xc0] sm:$0xff] %vm676, %v775
        %808 = vst.msk [vmem:[%s217 + $0xc8] sm:$0xff] %vm676, %v776
        %809 = vst.msk [vmem:[%s217 + $0xd0] sm:$0xff] %vm676, %v777
        %810 = vst.msk [vmem:[%s217 + $0xd8] sm:$0xff] %vm676, %v778
        %811 = vst.msk [vmem:[%s217 + $0xe0] sm:$0xff] %vm676, %v779
        %812 = vst.msk [vmem:[%s217 + $0xe8] sm:$0xff] %vm676, %v780
        %813 = vst.msk [vmem:[%s217 + $0xf0] sm:$0xff] %vm676, %v781
        %814 = vst.msk [vmem:[%s217 + $0xf8] sm:$0xff] %vm676, %v782
      $region40: #{tpu_custom_call.1} parent=31 // pred_fallthru
        _
      %s815 = smul.u32 32, %s18
      %p816 = scmp.lt.s32.totalorder %s815, 63
      %s817 = scalar_select %p816, %s815, 63
      %s818 = smul.addr %s817, 8
      %s819 = scalar_lea.vmem %s3, %s818
      // Predicated region
      $region41: #{tpu_custom_call.1} parent=31 // pred_check
        %p820 = pneg %p119
      $region42: #{tpu_custom_call.1} parent=31 // pred_check_branch
        %822 = sbr.rel (%p820) target = $region44
      $region43: #{tpu_custom_call.1} parent=31 // pred_region
        %s823 = smul.u32 32, %s18
      $region44: #{tpu_custom_call.1} parent=31 // pred_fallthru
        _
    $region32: #{tpu_custom_call.1} parent=5 // pred_fallthru
      _
    %p824 = scmp.le.s32.totalorder 2, %s9
    // Predicated region
    $region45: #{tpu_custom_call.1} parent=5 // pred_check
      %p825 = pneg %p824
    $region46: #{tpu_custom_call.1} parent=5 // pred_check_branch
      %827 = sbr.rel (%p825) target = $region48
    $region47: #{tpu_custom_call.1} parent=5 // pred_region
      %s828 = ssub.s32 %s9, 2
      // Predicated region
      $region49: #{tpu_custom_call.1} parent=47 // pred_check
        %p829 = pneg %p125
      $region50: #{tpu_custom_call.1} parent=47 // pred_check_branch
        %831 = sbr.rel (%p829) target = $region52
      $region51: #{tpu_custom_call.1} parent=47 // pred_region
        %s832 = smul.u32 32, %s20
        %p833 = scmp.lt.s32.totalorder %s832, 63
        %s834 = scalar_select %p833, %s832, 63
        %s835 = smul.addr %s834, 8
        %s836 = scalar_lea.vmem %s3, %s835
      $region52: #{tpu_custom_call.1} parent=47 // pred_fallthru
        _
    $region48: #{tpu_custom_call.1} parent=5 // pred_fallthru
      _
  $region6: #{tpu_custom_call.1} parent=0 // loop_footer
    %s13 = sadd.s32 1, %s9
  $region7: #{tpu_custom_call.1} parent=0 // loop_footer_branch
    %8 = sbr.rel target = $region3
  $region8: #{tpu_custom_call.1} parent=0 // loop_exit
    _

</llo_original>
